<compile_context>
chip_gen: v7x
topology: tpu7x:2x2x1
jax: 0.10.0
libtpu: 0.0.40
codegen_flags: <defaults>
</compile_context>

<pallas_src>
import jax
import jax.numpy as jnp
from jax.experimental import pallas as pl
from jax.experimental.pallas import tpu as pltpu


# ---------------------------------------------------------------------------
# Kernels
# ---------------------------------------------------------------------------
def _pe_matmul_kernel(x_ref, w_ref, b_ref, o_ref):
    """Fast path: the whole contraction dim (K) is resident in VMEM.

    One MXU matmul + fused bias add, output written exactly once.  No
    accumulator scratch, no zero/add passes, no k grid axis.
    """
    o_ref[...] = (
        jnp.dot(x_ref[...], w_ref[...], preferred_element_type=jnp.float32)
        + b_ref[...].astype(jnp.float32)
    ).astype(o_ref.dtype)


def _pe_matmul_splitk_kernel(x_ref, w_ref, b_ref, o_ref, acc_ref):
    """Fallback path: K split across the last (arbitrary) grid axis."""
    k = pl.program_id(2)

    @pl.when(k == 0)
    def _():
        # Fold the bias into the accumulator init (saves one VALU pass over
        # the (tm, tn) tile compared to zeros + final add).
        acc_ref[...] = jnp.broadcast_to(
            b_ref[...].astype(jnp.float32), acc_ref.shape
        )

    acc_ref[...] += jnp.dot(
        x_ref[...], w_ref[...], preferred_element_type=jnp.float32
    )

    @pl.when(k == pl.num_programs(2) - 1)
    def _():
        o_ref[...] = acc_ref[...].astype(o_ref.dtype)


# ---------------------------------------------------------------------------
# Tile selection
# ---------------------------------------------------------------------------
_VMEM_BUDGET = 12 * 1024 * 1024  # stays under v5e's 16 MiB scoped default


def _pick_tm(m, cap, pack):
    """Largest sublane-aligned M tile <= cap.

    Prefers an exact divisor of m (no masked tail); otherwise returns `cap`
    and relies on Pallas' masked tail block (grid uses pl.cdiv).
    """
    cap = max(pack, (cap // pack) * pack)
    if m <= cap:
        return m  # full extent is always a legal block dim
    t = cap
    while t >= pack:
        if m % t == 0:
            break
        t -= pack
    if t >= pack and (t >= 256 or m // t <= 8):
        return t
    return cap  # masked tail block


def _pick_lane_tile(dim, cap):
    """Lane-dim tile: full dim, or a 128-multiple that divides `dim`."""
    if dim <= cap:
        return dim
    for c in range(cap - cap % 128, 127, -128):
        if dim % c == 0:
            return c
    return dim  # full-dim fallback (budget solver shrinks tm accordingly)


def _choose_tiles(m, k, d, in_itemsize, out_itemsize):
    pack = 16 if in_itemsize < 4 else 8

    # Preferred: whole-K / whole-D blocks -> weight VMEM-resident, single
    # matmul per output tile, no k axis / accumulator.
    w_bytes = 2 * k * d * in_itemsize + 2 * d * 4
    denom = 2 * k * in_itemsize + 2 * d * out_itemsize
    tm_cap = (_VMEM_BUDGET - w_bytes) // denom
    if tm_cap >= 64:
        tm = _pick_tm(m, min(512, int(tm_cap)), pack)
        return tm, k, d

    # Fallback (very large K*D): split lane dims, accumulate over K in f32.
    tn = _pick_lane_tile(d, 512)
    tk = _pick_lane_tile(k, 512)
    w_bytes = 2 * tk * tn * in_itemsize + 2 * tn * 4
    denom = 2 * tk * in_itemsize + 2 * tn * out_itemsize + 4 * tn  # + acc
    tm_cap = max(pack, (_VMEM_BUDGET - w_bytes) // denom)
    tm = _pick_tm(m, max(pack, min(512, int(tm_cap))), pack)
    return tm, tk, tn


# ---------------------------------------------------------------------------
# Forward pass
# ---------------------------------------------------------------------------
def patch_embedding_forward(x, weight, bias, patch_size, *, compute_dtype=None):
    """ViT patch embedding.

    x      : (B, C, H, W)
    weight : (dim, patch_dim)   -- PyTorch nn.Linear layout
    bias   : (dim,)
    returns: (B, N, dim) with N = (H // patch_size) * (W // patch_size),
             dtype == x.dtype.

    compute_dtype: dtype of the MXU operands.  Defaults to bf16 for f32/bf16
    inputs (accumulation stays f32, bias added in f32).  Pass x.dtype for a
    bit-for-bit f32 matmul.
    """
    B, C, H, W = x.shape
    p = patch_size
    if H % p != 0 or W % p != 0:
        raise ValueError("Image dimensions must be divisible by the patch size.")
    H_, W_ = H // p, W // p
    N = H_ * W_
    K = C * p * p
    D = weight.shape[0]
    assert weight.shape == (D, K)
    assert bias.shape == (D,)

    out_dtype = x.dtype
    if compute_dtype is None:
        if x.dtype == jnp.float32 or x.dtype == jnp.bfloat16:
            compute_dtype = jnp.bfloat16
        else:
            compute_dtype = x.dtype

    # Patch extraction: (B,C,H,W) -> (B,H_,W_,p,p,C) -> (B*N, K).  Pure layout
    # plumbing done at the XLA level (mirrors the PyTorch reshape/permute);
    # the downcast to compute_dtype is fused into the transpose so the
    # materialized intermediate is half size when compute_dtype is bf16.
    xp = (
        x.reshape(B, C, H_, p, W_, p)
        .transpose(0, 2, 4, 3, 5, 1)
        .astype(compute_dtype)
        .reshape(B * N, K)
    )
    w = weight.T.astype(compute_dtype)          # (K, D)
    b = bias.astype(jnp.float32).reshape(1, D)  # bias added in f32

    M = B * N
    isz = jnp.dtype(compute_dtype).itemsize
    osz = jnp.dtype(out_dtype).itemsize
    tm, tk, tn = _choose_tiles(M, K, D, isz, osz)

    gm = pl.cdiv(M, tm)   # tm may not divide M -> masked tail block
    gn = D // tn
    gk = K // tk

    if gk == 1:
        grid = (gm, gn)
        in_specs = [
            pl.BlockSpec((tm, K), lambda i, j: (i, 0)),
            pl.BlockSpec((K, tn), lambda i, j: (0, j)),
            pl.BlockSpec((1, tn), lambda i, j: (0, j)),
        ]
        out_specs = pl.BlockSpec((tm, tn), lambda i, j: (i, j))
        kernel = _pe_matmul_kernel
        scratch_shapes = ()
        dims = ("parallel", "parallel")
    else:
        grid = (gm, gn, gk)
        in_specs = [
            pl.BlockSpec((tm, tk), lambda i, j, k: (i, k)),
            pl.BlockSpec((tk, tn), lambda i, j, k: (k, j)),
            pl.BlockSpec((1, tn), lambda i, j, k: (0, j)),
        ]
        out_specs = pl.BlockSpec((tm, tn), lambda i, j, k: (i, j))
        kernel = _pe_matmul_splitk_kernel
        scratch_shapes = (pltpu.VMEM((tm, tn), jnp.float32),)
        dims = ("parallel", "parallel", "arbitrary")

    out = pl.pallas_call(
        kernel,
        out_shape=jax.ShapeDtypeStruct((M, D), out_dtype),
        grid=grid,
        in_specs=in_specs,
        out_specs=out_specs,
        scratch_shapes=scratch_shapes,
        compiler_params=pltpu.CompilerParams(dimension_semantics=dims),
        cost_estimate=pl.CostEstimate(
            flops=2 * M * K * D,
            bytes_accessed=M * K * isz + K * D * isz + D * 4 + M * D * osz,
            transcendentals=0,
        ),
    )(xp, w, b)

    return out.reshape(B, N, D)


# ---------------------------------------------------------------------------
# Self-test
# ---------------------------------------------------------------------------
if __name__ == "__main__":
    key = jax.random.PRNGKey(0)
    k_x, k_w, k_b = jax.random.split(key, 3)

    # Small shapes consistent with the module: 16x16 image, 3 channels,
    # patch 4 -> N = 16 patches, patch_dim = 48, hidden dim = 32.
    B, C, H, W = 2, 3, 16, 16
    patch_size = 4
    dim = 32
    patch_dim = C * patch_size * patch_size

    x = jax.random.normal(k_x, (B, C, H, W), dtype=jnp.float32)
    weight = jax.random.normal(k_w, (dim, patch_dim), dtype=jnp.float32) * 0.02
    bias = jax.random.normal(k_b, (dim,), dtype=jnp.float32) * 0.02

    out = patch_embedding_forward(x, weight, bias, patch_size)
    out = jax.block_until_ready(out)

    # Plain-JAX f32 reference (same math as the PyTorch module).
    H_, W_ = H // patch_size, W // patch_size
    xp_ref = (
        x.reshape(B, C, H_, patch_size, W_, patch_size)
        .transpose(0, 2, 4, 3, 5, 1)
        .reshape(B, H_ * W_, patch_dim)
    )
    ref = jnp.einsum("bnk,dk->bnd", xp_ref, weight) + bias

    assert out.shape == (B, H_ * W_, dim)
    assert out.dtype == x.dtype
    # bf16 operands / f32 accumulation vs pure-f32 reference: loose tolerance.
    err = float(jnp.max(jnp.abs(out - ref)))
    assert err < 2e-2, err

    print("KERNEL_OK")
</pallas_src>

<mosaic_0001>
module attributes {stable_mosaic.version = 11 : i64} {
  func.func @_pe_matmul_kernel(%arg0: i32, %arg1: i32, %arg2: memref<32x48xbf16, #tpu.memory_space<vmem>>, %arg3: memref<48x32xbf16, #tpu.memory_space<vmem>>, %arg4: memref<1x32xf32, #tpu.memory_space<vmem>>, %arg5: memref<32x32xf32, #tpu.memory_space<vmem>>) attributes {dimension_semantics = [#tpu.dimension_semantics<parallel>, #tpu.dimension_semantics<parallel>], iteration_bounds = array<i64: 1, 1>, scalar_prefetch = 0 : i64, scratch_operands = 0 : i64, tpu.core_type = #tpu.core_type<tc>, window_params = [{transform_indices = @transform_0, window_bounds = array<i64: 32, 48>}, {transform_indices = @transform_1, window_bounds = array<i64: 48, 32>}, {transform_indices = @transform_2, window_bounds = array<i64: 1, 32>}, {transform_indices = @transform_3, window_bounds = array<i64: 32, 32>}]} {
    %c0 = arith.constant 0 : index
    %c0_0 = arith.constant 0 : index
    %0 = vector.load %arg2[%c0, %c0_0] : memref<32x48xbf16, #tpu.memory_space<vmem>>, vector<32x48xbf16>
    %c0_1 = arith.constant 0 : index
    %c0_2 = arith.constant 0 : index
    %1 = vector.load %arg3[%c0_1, %c0_2] : memref<48x32xbf16, #tpu.memory_space<vmem>>, vector<48x32xbf16>
    %cst = arith.constant dense<0.000000e+00> : vector<32x32xf32>
    %2 = tpu.matmul %0, %1, %cst {dimension_numbers = #tpu.dot_dimension_numbers<[1], [0], [0], [1], [0, 0, 1, 1], [], []>} : vector<32x48xbf16>, vector<48x32xbf16>, vector<32x32xf32> -> vector<32x32xf32>
    %c0_3 = arith.constant 0 : index
    %c0_4 = arith.constant 0 : index
    %3 = vector.load %arg4[%c0_3, %c0_4] : memref<1x32xf32, #tpu.memory_space<vmem>>, vector<1x32xf32>
    %4 = vector.broadcast %3 : vector<1x32xf32> to vector<32x32xf32>
    %5 = arith.addf %2, %4 : vector<32x32xf32>
    %c0_5 = arith.constant 0 : index
    %c0_6 = arith.constant 0 : index
    %6 = vector.load %arg5[%c0_5, %c0_6] : memref<32x32xf32, #tpu.memory_space<vmem>>, vector<32x32xf32>
    tpu.vector_store %arg5[%c0_5, %c0_6], %5 {strides = array<i32>} : memref<32x32xf32, #tpu.memory_space<vmem>>, vector<32x32xf32>,
    return
  }
  func.func @transform_0(%arg0: i32, %arg1: i32) -> (i32, i32) {
    %c0_i32 = arith.constant 0 : i32
    %c0_i32_0 = arith.constant 0 : i32
    return %arg0, %c0_i32 : i32, i32
  }
  func.func @transform_1(%arg0: i32, %arg1: i32) -> (i32, i32) {
    %c0_i32 = arith.constant 0 : i32
    %c0_i32_0 = arith.constant 0 : i32
    return %c0_i32, %arg1 : i32, i32
  }
  func.func @transform_2(%arg0: i32, %arg1: i32) -> (i32, i32) {
    %c0_i32 = arith.constant 0 : i32
    %c0_i32_0 = arith.constant 0 : i32
    return %c0_i32, %arg1 : i32, i32
  }
  func.func @transform_3(%arg0: i32, %arg1: i32) -> (i32, i32) {
    %c0_i32 = arith.constant 0 : i32
    return %arg0, %arg1 : i32, i32
  }
}

</mosaic_0001>

<llo_original>
// kernel: tpu_custom_call.1
$region0: #{tpu_custom_call.1}
  #allocation0 [shape = 'u32[]', space=smem, size = 0x4, offset = 0x4, fixed_abs, tag = 'smem constant byte address 0x4 - core index']
  #allocation1 [shape = 'u32[144,128]{1,0:T(1,128)}', space=vmem, size = 0x12000, scoped, tag = 'internal scratch']
  %s0 = inlined_call_operand.vmem [shape: bf16[32,48], index: 0, kind: input, shape index: {}]
  %s1 = inlined_call_operand.vmem [shape: bf16[48,32], index: 1, kind: input, shape index: {}]
  %s2 = inlined_call_operand.vmem [shape: f32[1,32], index: 2, kind: input, shape index: {}]
  %s3 = inlined_call_operand.hbm [shape: f32[32,32], index: 3, kind: output, shape index: {}]
  %s4 = sld [smem:[#allocation0]]
  $region22: #{tpu_custom_call.1} parent=0
    _
  %s6 = ssub.s32 1, %s4
  %s7 = scalar_select 0, %s6, %s4
  $region1: #{tpu_custom_call.1} parent=0
    #allocation2 [shape = 'u8[16384]{0}', space=vmem, size = 0x4000, scoped, tag = 'output window, operand 0, single buffered']
    #allocation3 [shape = 's32[1]{0}', space=sflag, size = 0x4, scoped, tag = 'scoped memory for tpu_custom_call.1']
    %8 = vsyncpa [#allocation3], 0
    // Predicated region
    $region2: #{tpu_custom_call.1} parent=1 // pred_check
      _
    $region3: #{tpu_custom_call.1} parent=1 // pred_check_branch
      %10 = sbr.rel (0) target = $region5
    $region4: #{tpu_custom_call.1} parent=1 // pred_region
      _
    $region5: #{tpu_custom_call.1} parent=1 // pred_fallthru
      _
    // Predicated region
    $region6: #{tpu_custom_call.1} parent=1 // pred_check
      _
    $region7: #{tpu_custom_call.1} parent=1 // pred_check_branch
      %12 = sbr.rel (0) target = $region9
    $region8: #{tpu_custom_call.1} parent=1 // pred_region
      _
    $region9: #{tpu_custom_call.1} parent=1 // pred_fallthru
      _
    // Predicated region
    $region10: #{tpu_custom_call.1} parent=1 // pred_check
      _
    $region11: #{tpu_custom_call.1} parent=1 // pred_check_branch
      %14 = sbr.rel (0) target = $region13
    $region12: #{tpu_custom_call.1} parent=1 // pred_region
      _
    $region13: #{tpu_custom_call.1} parent=1 // pred_fallthru
      _
    %v16 = vld [vmem:[%s0] sm:$0xf]
    %v17 = vld [vmem:[%s0 + $0x4] sm:$0xf]
    %v18 = vld [vmem:[%s0 + $0x8] sm:$0xf]
    %v19 = vld [vmem:[%s0 + $0xc] sm:$0xf]
    %v20 = vld [vmem:[%s1] sm:$0xf]
    %v21 = vld [vmem:[%s1 + $0x4] sm:$0xf]
    %v22 = vld [vmem:[%s1 + $0x8] sm:$0xf]
    %v23 = vld [vmem:[%s1 + $0xc] sm:$0xf]
    %v24 = vld [vmem:[%s1 + $0x10] sm:$0xf]
    %v25 = vld [vmem:[%s1 + $0x14] sm:$0xf]
    %v26 = vld [vmem:[%s2] sm:$0x1]
    %v28 = vlaneseq
    %v29 = vshrl.u32 %v28, 7
    %v30 = vsub.s32 0, %v29
    %v31 = vrot.slane %v26, %v30
    %v37 = vunpack.c.l.b16 %v16
    %v38 = vunpack.c.l.b16 %v17
    %v39 = vunpack.c.l.b16 %v18
    %v40 = vunpack.c.l.b16 %v19
    %v41 = vpack.c.b16 %v38, %v37
    %v42 = vpack.c.b16 %v40, %v39
    %v49 = vunpack.c.l.b16 %v20
    %v50 = vunpack.c.l.b16 %v21
    %v51 = vunpack.c.l.b16 %v22
    %v52 = vunpack.c.l.b16 %v23
    %v53 = vunpack.c.l.b16 %v24
    %v54 = vunpack.c.l.b16 %v25
    %v55 = vpack.c.b16 %v50, %v49
    %v56 = vpack.c.b16 %v52, %v51
    %v57 = vpack.c.b16 %v54, %v53
    %vm61 = vcmask 392192
    %v63 = vsel %vm61, %v41, 0
    %v66 = vsel %vm61, %v42, 0
    %68 = vmatprep.subr.bf16.mxu0 0
    %69 = vmatpush1.bf16.msra.mxu0 %v55
    %70 = vmatprep.subr.bf16.mxu0 0
    %71 = vmatpush1.bf16.msra.mxu0 %v56
    %72 = vmatprep.subr.bf16.mxu0 0
    %73 = vmatpush1.bf16.msra.mxu0 %v57
    %74 = vmatprep.subr.bf16.mxu0 0
    %75 = vmatpush1.bf16.msra.mxu0 0
    %76 = vmatprep.subr.bf16.mxu0 0
    %77 = vmatpush1.bf16.msra.mxu0 0
    %78 = vmatprep.subr.bf16.mxu0 0
    %79 = vmatpush1.bf16.msra.mxu0 0
    %80 = vmatprep.subr.bf16.mxu0 0
    %81 = vmatpush1.bf16.msra.mxu0 0
    %82 = vmatprep.subr.bf16.mxu0 0
    %83 = vmatpush1.bf16.msra.mxu0 0
    %84 = vmatprep.subr.bf16.mxu0 0
    %85 = vmatpush1.bf16.msra.mxu0 0
    %86 = vmatprep.subr.bf16.mxu0 0
    %87 = vmatpush1.bf16.msra.mxu0 0
    %88 = vmatprep.subr.bf16.mxu0 0
    %89 = vmatpush1.bf16.msra.mxu0 0
    %90 = vmatprep.subr.bf16.mxu0 0
    %91 = vmatpush1.bf16.msra.mxu0 0
    %92 = vmatprep.subr.bf16.mxu0 0
    %93 = vmatpush1.bf16.msra.mxu0 0
    %94 = vmatprep.subr.bf16.mxu0 0
    %95 = vmatpush1.bf16.msra.mxu0 0
    %96 = vmatprep.subr.bf16.mxu0 0
    %97 = vmatpush1.bf16.msra.mxu0 0
    %98 = vmatprep.subr.bf16.mxu0 0
    %99 = vmatpush1.bf16.msra.mxu0 0
    %100 = vmatprep.mubr.bf16.mxu0 0
    %101 = vmatmul.mubr.bf16.gmra.mrb[0].mxu0 %v63
    %v102 = vpop.f32.mrb[0].mxu0
    %v103 = vadd.f32 %v31, %v102
    %v104 = vpop.f32.mrb[0].mxu0
    %v105 = vpop.f32.mrb[0].mxu0
    %v106 = vadd.f32 %v31, %v105
    %v107 = vpop.f32.mrb[0].mxu0
    %108 = vmatprep.mubr.bf16.mxu0 0
    %109 = vmatmul.mubr.bf16.gmra.mrb[0].mxu0 %v66
    %v110 = vpop.f32.mrb[0].mxu0
    %v111 = vadd.f32 %v31, %v110
    %v112 = vpop.f32.mrb[0].mxu0
    %v113 = vpop.f32.mrb[0].mxu0
    %v114 = vadd.f32 %v31, %v113
    %v115 = vpop.f32.mrb[0].mxu0
    %116 = vdwg.mxu0
    %vm117 = vcmask 261120
    %118 = vst.msk [vmem:[#allocation2] sm:$0xff] %vm117, %v103
    %119 = vst.msk [vmem:[#allocation2 + $0x8] sm:$0xff] %vm117, %v106
    %120 = vst.msk [vmem:[#allocation2 + $0x10] sm:$0xff] %vm117, %v111
    %121 = vst.msk [vmem:[#allocation2 + $0x18] sm:$0xff] %vm117, %v114
    // Predicated region
    $region14: #{tpu_custom_call.1} parent=1 // pred_check
      _
    $region15: #{tpu_custom_call.1} parent=1 // pred_check_branch
      %123 = sbr.rel (0) target = $region17
    $region16: #{tpu_custom_call.1} parent=1 // pred_region
      %s125 = ssub.s32 512, 512
      %126 = vsyncadd [#allocation3], %s125
      %s127 = sshll.u32 [#allocation2], 4
      %s128 = int_to_ptr.vmem [resolvable:$true] %s127
      %133 = dma.vmem_to_hbm [thread:$0]  %s128, 512, %s3, [#allocation3], 128, 128, 8
    $region17: #{tpu_custom_call.1} parent=1 // pred_fallthru
      _
    // Predicated region
    $region18: #{tpu_custom_call.1} parent=1 // pred_check
      _
    $region19: #{tpu_custom_call.1} parent=1 // pred_check_branch
      %135 = sbr.rel (0) target = $region21
    $region20: #{tpu_custom_call.1} parent=1 // pred_region
      %136 = dma.done [#allocation3], 512
    $region21: #{tpu_custom_call.1} parent=1 // pred_fallthru
      _
    %137 = vsyncpa [#allocation3], 1

</llo_original>
